<compile_context>
chip_gen: v7x
topology: tpu7x:2x2x1
jax: 0.10.0
libtpu: 0.0.40
codegen_flags: <defaults>
</compile_context>

<pallas_src>
import math

import jax
import jax.numpy as jnp
from jax.experimental import pallas as pl
from jax.experimental.pallas import tpu as pltpu

STATE_DIM = 3      # Pendulum-v0 observation_space.shape[0]
ACTION_DIM = 1     # Pendulum-v0 action_space.shape[0]
HIDDEN = 128
CAT = 2 * HIDDEN   # 256


def critic_kernel(s_ref, a_ref, ws_ref, bs_ref, wa_ref, ba_ref,
                  w2_ref, b2_ref, w3_ref, b3_ref, o_ref):
    s = s_ref[...]          # (TB, STATE_DIM)
    a = a_ref[...]          # (TB, ACTION_DIM)
    ws = ws_ref[...]        # (STATE_DIM, 128)
    wa = wa_ref[...]        # (ACTION_DIM, 128)

    # fcs: Linear(3, 128) + ReLU as VPU broadcast-FMAs (K=3 would waste the MXU).
    hs = s[:, 0:1] * ws[0:1, :] + bs_ref[...]
    for k in range(1, STATE_DIM):
        hs = hs + s[:, k:k + 1] * ws[k:k + 1, :]
    hs = jnp.maximum(hs, 0.0)                                 # (TB, 128)

    # fca: Linear(1, 128) + ReLU as a single VPU broadcast-FMA.
    ha = a[:, 0:1] * wa[0:1, :] + ba_ref[...]
    for k in range(1, ACTION_DIM):
        ha = ha + a[:, k:k + 1] * wa[k:k + 1, :]
    ha = jnp.maximum(ha, 0.0)                                 # (TB, 128)

    # fc[0]: Linear(256, 128) + ReLU — the only MXU matmul, full 256-wide K.
    h1 = jnp.concatenate([hs, ha], axis=-1)                   # (TB, 256)
    h2 = jnp.dot(h1, w2_ref[...], preferred_element_type=jnp.float32) + b2_ref[...]
    h2 = jnp.maximum(h2, 0.0)                                 # (TB, 128)

    # fc[2]: Linear(128, 1) as VPU mul + lane reduce (N=1 would waste the MXU).
    q = jnp.sum(h2 * w3_ref[...], axis=-1, keepdims=True) + b3_ref[0, 0]
    o_ref[...] = q.astype(o_ref.dtype)                        # (TB, 1)


def _round_up(x, m):
    return ((x + m - 1) // m) * m


def critic_forward(state, action, params, *, tb=None):
    """state: (B, STATE_DIM), action: (B, ACTION_DIM) -> Q: (B, 1), all float32."""
    ws, bs, wa, ba, w2, b2, w3_row, b3 = params
    B = state.shape[0]

    # Batch tile: multiple of 8 sublanes; amortize pipeline overhead for big B,
    # sized well under v7x's 32 MiB default scoped VMEM (tb*~1.5KB activations).
    if tb is None:
        tb = min(1024, _round_up(B, 8))
    Bp = _round_up(B, tb)
    if Bp != B:
        pad = Bp - B
        state = jnp.pad(state, ((0, pad), (0, 0)))
        action = jnp.pad(action, ((0, pad), (0, 0)))
    nb = Bp // tb

    def resident(arr):
        zeros = (0,) * arr.ndim
        return pl.BlockSpec(arr.shape, lambda i: zeros)   # stays VMEM-resident

    out = pl.pallas_call(
        critic_kernel,
        out_shape=jax.ShapeDtypeStruct((Bp, 1), jnp.float32),
        grid_spec=pltpu.PrefetchScalarGridSpec(
            num_scalar_prefetch=0,
            grid=(nb,),
            in_specs=[
                pl.BlockSpec((tb, STATE_DIM), lambda i: (i, 0)),
                pl.BlockSpec((tb, ACTION_DIM), lambda i: (i, 0)),
                resident(ws), resident(bs),
                resident(wa), resident(ba),
                resident(w2), resident(b2),
                resident(w3_row),
                pl.BlockSpec(memory_space=pltpu.MemorySpace.SMEM),  # scalar b3
            ],
            out_specs=pl.BlockSpec((tb, 1), lambda i: (i, 0)),
        ),
        compiler_params=pltpu.CompilerParams(
            dimension_semantics=("parallel",)),  # shards batch across v7x's 2 TCs
    )(state, action, ws, bs, wa, ba, w2, b2, w3_row, b3)
    return out[:B]


def xavier_normal(key, fan_in, fan_out):
    # Matches torch.nn.init.xavier_normal_: std = sqrt(2 / (fan_in + fan_out)).
    std = math.sqrt(2.0 / (fan_in + fan_out))
    # stored as (in, out) so the kernel does x @ W
    return std * jax.random.normal(key, (fan_in, fan_out), dtype=jnp.float32)


def build_params(key):
    k1, k2, k3, k4 = jax.random.split(key, 4)
    ws = xavier_normal(k1, STATE_DIM, HIDDEN)           # fcs[0].weight^T
    bs = jnp.zeros((1, HIDDEN), jnp.float32)            # fcs[0].bias
    wa = xavier_normal(k2, ACTION_DIM, HIDDEN)          # fca[0].weight^T
    ba = jnp.zeros((1, HIDDEN), jnp.float32)            # fca[0].bias
    w2 = xavier_normal(k3, CAT, HIDDEN)                 # fc[0].weight^T
    b2 = jnp.zeros((1, HIDDEN), jnp.float32)            # fc[0].bias
    # fc[2].weight is (1, 128) in torch; keep it as a (1, 128) row for the reduce.
    w3_row = xavier_normal(k4, HIDDEN, 1).T             # (1, 128)
    b3 = jnp.zeros((1, 1), jnp.float32)                 # fc[2].bias (scalar, SMEM)
    return (ws, bs, wa, ba, w2, b2, w3_row, b3)


def critic_ref(state, action, params):
    ws, bs, wa, ba, w2, b2, w3_row, b3 = params
    hs = jnp.maximum(state @ ws + bs, 0.0)
    ha = jnp.maximum(action @ wa + ba, 0.0)
    h1 = jnp.concatenate([hs, ha], axis=1)
    h2 = jnp.maximum(h1 @ w2 + b2, 0.0)
    return h2 @ w3_row.T + b3


if __name__ == "__main__":
    key = jax.random.PRNGKey(0)
    pkey, skey, akey = jax.random.split(key, 3)
    params = build_params(pkey)

    batch = 8
    state = jax.random.normal(skey, (batch, STATE_DIM), dtype=jnp.float32)
    action = jax.random.normal(akey, (batch, ACTION_DIM), dtype=jnp.float32)

    q = critic_forward(state, action, params)
    q = jax.block_until_ready(q)

    q_ref = critic_ref(state, action, params)
    assert q.shape == (batch, 1), q.shape
    assert jnp.allclose(q, q_ref, atol=1e-5, rtol=1e-5), "mismatch vs reference"
    print("KERNEL_OK")
</pallas_src>

<mosaic_0001>
module attributes {stable_mosaic.version = 11 : i64} {
  func.func @critic_kernel(%arg0: i32, %arg1: memref<8x3xf32, #tpu.memory_space<vmem>>, %arg2: memref<8x1xf32, #tpu.memory_space<vmem>>, %arg3: memref<3x128xf32, #tpu.memory_space<vmem>>, %arg4: memref<1x128xf32, #tpu.memory_space<vmem>>, %arg5: memref<1x128xf32, #tpu.memory_space<vmem>>, %arg6: memref<1x128xf32, #tpu.memory_space<vmem>>, %arg7: memref<256x128xf32, #tpu.memory_space<vmem>>, %arg8: memref<1x128xf32, #tpu.memory_space<vmem>>, %arg9: memref<1x128xf32, #tpu.memory_space<vmem>>, %arg10: memref<1x1xf32, #tpu.memory_space<smem>>, %arg11: memref<8x1xf32, #tpu.memory_space<vmem>>) attributes {dimension_semantics = [#tpu.dimension_semantics<parallel>], iteration_bounds = array<i64: 1>, scalar_prefetch = 0 : i64, scratch_operands = 0 : i64, tpu.core_type = #tpu.core_type<tc>, window_params = [{transform_indices = @transform_0, window_bounds = array<i64: 8, 3>}, {transform_indices = @transform_1, window_bounds = array<i64: 8, 1>}, {pipeline_mode = #tpu.pipeline_mode<synchronous>, transform_indices = @transform_2, window_bounds = array<i64: 3, 128>}, {pipeline_mode = #tpu.pipeline_mode<synchronous>, transform_indices = @transform_3, window_bounds = array<i64: 1, 128>}, {pipeline_mode = #tpu.pipeline_mode<synchronous>, transform_indices = @transform_4, window_bounds = array<i64: 1, 128>}, {pipeline_mode = #tpu.pipeline_mode<synchronous>, transform_indices = @transform_5, window_bounds = array<i64: 1, 128>}, {pipeline_mode = #tpu.pipeline_mode<synchronous>, transform_indices = @transform_6, window_bounds = array<i64: 256, 128>}, {pipeline_mode = #tpu.pipeline_mode<synchronous>, transform_indices = @transform_7, window_bounds = array<i64: 1, 128>}, {pipeline_mode = #tpu.pipeline_mode<synchronous>, transform_indices = @transform_8, window_bounds = array<i64: 1, 128>}, {transform_indices = @transform_9, window_bounds = array<i64: 1, 1>}, {transform_indices = @transform_10, window_bounds = array<i64: 8, 1>}]} {
    %c0 = arith.constant 0 : index
    %c0_0 = arith.constant 0 : index
    %0 = vector.load %arg1[%c0, %c0_0] : memref<8x3xf32, #tpu.memory_space<vmem>>, vector<8x3xf32>
    %c0_1 = arith.constant 0 : index
    %c0_2 = arith.constant 0 : index
    %1 = vector.load %arg2[%c0_1, %c0_2] : memref<8x1xf32, #tpu.memory_space<vmem>>, vector<8x1xf32>
    %c0_3 = arith.constant 0 : index
    %c0_4 = arith.constant 0 : index
    %2 = vector.load %arg3[%c0_3, %c0_4] : memref<3x128xf32, #tpu.memory_space<vmem>>, vector<3x128xf32>
    %c0_5 = arith.constant 0 : index
    %c0_6 = arith.constant 0 : index
    %3 = vector.load %arg5[%c0_5, %c0_6] : memref<1x128xf32, #tpu.memory_space<vmem>>, vector<1x128xf32>
    %4 = vector.extract_strided_slice %0 {offsets = [0, 0], sizes = [8, 1], strides = [1, 1]} : vector<8x3xf32> to vector<8x1xf32>
    %5 = vector.extract_strided_slice %2 {offsets = [0, 0], sizes = [1, 128], strides = [1, 1]} : vector<3x128xf32> to vector<1x128xf32>
    %6 = vector.broadcast %4 : vector<8x1xf32> to vector<8x128xf32>
    %7 = vector.broadcast %5 : vector<1x128xf32> to vector<8x128xf32>
    %8 = arith.mulf %6, %7 : vector<8x128xf32>
    %c0_7 = arith.constant 0 : index
    %c0_8 = arith.constant 0 : index
    %9 = vector.load %arg4[%c0_7, %c0_8] : memref<1x128xf32, #tpu.memory_space<vmem>>, vector<1x128xf32>
    %10 = vector.broadcast %9 : vector<1x128xf32> to vector<8x128xf32>
    %11 = arith.addf %8, %10 : vector<8x128xf32>
    %12 = vector.extract_strided_slice %0 {offsets = [0, 1], sizes = [8, 1], strides = [1, 1]} : vector<8x3xf32> to vector<8x1xf32>
    %13 = vector.extract_strided_slice %2 {offsets = [1, 0], sizes = [1, 128], strides = [1, 1]} : vector<3x128xf32> to vector<1x128xf32>
    %14 = vector.broadcast %12 : vector<8x1xf32> to vector<8x128xf32>
    %15 = vector.broadcast %13 : vector<1x128xf32> to vector<8x128xf32>
    %16 = arith.mulf %14, %15 : vector<8x128xf32>
    %17 = arith.addf %11, %16 : vector<8x128xf32>
    %18 = vector.extract_strided_slice %0 {offsets = [0, 2], sizes = [8, 1], strides = [1, 1]} : vector<8x3xf32> to vector<8x1xf32>
    %19 = vector.extract_strided_slice %2 {offsets = [2, 0], sizes = [1, 128], strides = [1, 1]} : vector<3x128xf32> to vector<1x128xf32>
    %20 = vector.broadcast %18 : vector<8x1xf32> to vector<8x128xf32>
    %21 = vector.broadcast %19 : vector<1x128xf32> to vector<8x128xf32>
    %22 = arith.mulf %20, %21 : vector<8x128xf32>
    %23 = arith.addf %17, %22 : vector<8x128xf32>
    %cst = arith.constant 0.000000e+00 : f32
    %24 = vector.broadcast %cst : f32 to vector<8x128xf32>
    %25 = arith.maximumf %23, %24 : vector<8x128xf32>
    %26 = vector.broadcast %1 : vector<8x1xf32> to vector<8x128xf32>
    %27 = vector.broadcast %3 : vector<1x128xf32> to vector<8x128xf32>
    %28 = arith.mulf %26, %27 : vector<8x128xf32>
    %c0_9 = arith.constant 0 : index
    %c0_10 = arith.constant 0 : index
    %29 = vector.load %arg6[%c0_9, %c0_10] : memref<1x128xf32, #tpu.memory_space<vmem>>, vector<1x128xf32>
    %30 = vector.broadcast %29 : vector<1x128xf32> to vector<8x128xf32>
    %31 = arith.addf %28, %30 : vector<8x128xf32>
    %cst_11 = arith.constant 0.000000e+00 : f32
    %32 = vector.broadcast %cst_11 : f32 to vector<8x128xf32>
    %33 = arith.maximumf %31, %32 : vector<8x128xf32>
    %34 = tpu.concatenate %25, %33 in 1 : vector<8x128xf32>, vector<8x128xf32> -> vector<8x256xf32>
    %c0_12 = arith.constant 0 : index
    %c0_13 = arith.constant 0 : index
    %35 = vector.load %arg7[%c0_12, %c0_13] : memref<256x128xf32, #tpu.memory_space<vmem>>, vector<256x128xf32>
    %cst_14 = arith.constant dense<0.000000e+00> : vector<8x128xf32>
    %36 = tpu.matmul %34, %35, %cst_14 {dimension_numbers = #tpu.dot_dimension_numbers<[1], [0], [0], [1], [0, 0, 1, 1], [], []>} : vector<8x256xf32>, vector<256x128xf32>, vector<8x128xf32> -> vector<8x128xf32>
    %c0_15 = arith.constant 0 : index
    %c0_16 = arith.constant 0 : index
    %37 = vector.load %arg8[%c0_15, %c0_16] : memref<1x128xf32, #tpu.memory_space<vmem>>, vector<1x128xf32>
    %38 = vector.broadcast %37 : vector<1x128xf32> to vector<8x128xf32>
    %39 = arith.addf %36, %38 : vector<8x128xf32>
    %cst_17 = arith.constant 0.000000e+00 : f32
    %40 = vector.broadcast %cst_17 : f32 to vector<8x128xf32>
    %41 = arith.maximumf %39, %40 : vector<8x128xf32>
    %c0_18 = arith.constant 0 : index
    %c0_19 = arith.constant 0 : index
    %42 = vector.load %arg9[%c0_18, %c0_19] : memref<1x128xf32, #tpu.memory_space<vmem>>, vector<1x128xf32>
    %43 = vector.broadcast %42 : vector<1x128xf32> to vector<8x128xf32>
    %44 = arith.mulf %41, %43 : vector<8x128xf32>
    %cst_20 = arith.constant dense<0.000000e+00> : vector<8xf32>
    %45 = vector.multi_reduction <add>, %44, %cst_20 [1] : vector<8x128xf32> to vector<8xf32>
    %46 = vector.shape_cast %45 : vector<8xf32> to vector<8x1xf32>
    %c0_21 = arith.constant 0 : index
    %c0_22 = arith.constant 0 : index
    %47 = memref.load %arg10[%c0_21, %c0_22] : memref<1x1xf32, #tpu.memory_space<smem>>
    %48 = vector.broadcast %47 : f32 to vector<8x1xf32>
    %49 = arith.addf %46, %48 : vector<8x1xf32>
    %c0_23 = arith.constant 0 : index
    %c0_24 = arith.constant 0 : index
    %50 = vector.load %arg11[%c0_23, %c0_24] : memref<8x1xf32, #tpu.memory_space<vmem>>, vector<8x1xf32>
    tpu.vector_store %arg11[%c0_23, %c0_24], %49 {strides = array<i32>} : memref<8x1xf32, #tpu.memory_space<vmem>>, vector<8x1xf32>,
    return
  }
  func.func @transform_0(%arg0: i32) -> (i32, i32) {
    %c0_i32 = arith.constant 0 : i32
    %c0_i32_0 = arith.constant 0 : i32
    return %arg0, %c0_i32 : i32, i32
  }
  func.func @transform_1(%arg0: i32) -> (i32, i32) {
    %c0_i32 = arith.constant 0 : i32
    %c0_i32_0 = arith.constant 0 : i32
    return %arg0, %c0_i32 : i32, i32
  }
  func.func @transform_2(%arg0: i32) -> (i32, i32) {
    %c0_i32 = arith.constant 0 : i32
    %c0_i32_0 = arith.constant 0 : i32
    %c0_i32_1 = arith.constant 0 : i32
    return %c0_i32, %c0_i32_0 : i32, i32
  }
  func.func @transform_3(%arg0: i32) -> (i32, i32) {
    %c0_i32 = arith.constant 0 : i32
    %c0_i32_0 = arith.constant 0 : i32
    %c0_i32_1 = arith.constant 0 : i32
    return %c0_i32, %c0_i32_0 : i32, i32
  }
  func.func @transform_4(%arg0: i32) -> (i32, i32) {
    %c0_i32 = arith.constant 0 : i32
    %c0_i32_0 = arith.constant 0 : i32
    %c0_i32_1 = arith.constant 0 : i32
    return %c0_i32, %c0_i32_0 : i32, i32
  }
  func.func @transform_5(%arg0: i32) -> (i32, i32) {
    %c0_i32 = arith.constant 0 : i32
    %c0_i32_0 = arith.constant 0 : i32
    %c0_i32_1 = arith.constant 0 : i32
    return %c0_i32, %c0_i32_0 : i32, i32
  }
  func.func @transform_6(%arg0: i32) -> (i32, i32) {
    %c0_i32 = arith.constant 0 : i32
    %c0_i32_0 = arith.constant 0 : i32
    %c0_i32_1 = arith.constant 0 : i32
    return %c0_i32, %c0_i32_0 : i32, i32
  }
  func.func @transform_7(%arg0: i32) -> (i32, i32) {
    %c0_i32 = arith.constant 0 : i32
    %c0_i32_0 = arith.constant 0 : i32
    %c0_i32_1 = arith.constant 0 : i32
    return %c0_i32, %c0_i32_0 : i32, i32
  }
  func.func @transform_8(%arg0: i32) -> (i32, i32) {
    %c0_i32 = arith.constant 0 : i32
    %c0_i32_0 = arith.constant 0 : i32
    %c0_i32_1 = arith.constant 0 : i32
    return %c0_i32, %c0_i32_0 : i32, i32
  }
  func.func @transform_9(%arg0: i32) -> (i32, i32) {
    %c0_i32 = arith.constant 0 : i32
    %c0_i32_0 = arith.constant 0 : i32
    %c0_i32_1 = arith.constant 0 : i32
    return %c0_i32, %c0_i32_0 : i32, i32
  }
  func.func @transform_10(%arg0: i32) -> (i32, i32) {
    %c0_i32 = arith.constant 0 : i32
    %c0_i32_0 = arith.constant 0 : i32
    return %arg0, %c0_i32 : i32, i32
  }
}

</mosaic_0001>

<llo_original>
// kernel: tpu_custom_call.1
$region0: #{tpu_custom_call.1}
  #allocation0 [shape = 'u32[]', space=smem, size = 0x4, offset = 0x4, fixed_abs, tag = 'smem constant byte address 0x4 - core index']
  #allocation1 [shape = 'u32[144,128]{1,0:T(1,128)}', space=vmem, size = 0x12000, scoped, tag = 'internal scratch']
  #allocation2 [shape = 'f32[1,1]{1,0:T(1,128)S(6)}', space=smem, size = 0x200, scoped, tag = 'scoped memory for tpu_custom_call.1']
  %s0 = inlined_call_operand.vmem [shape: f32[8,3], index: 0, kind: input, shape index: {}]
  %s1 = inlined_call_operand.vmem [shape: f32[8,1], index: 1, kind: input, shape index: {}]
  %s2 = inlined_call_operand.vmem [shape: f32[3,128], index: 2, kind: input, shape index: {}]
  %s3 = inlined_call_operand.vmem [shape: f32[1,128], index: 3, kind: input, shape index: {}]
  %s4 = inlined_call_operand.vmem [shape: f32[1,128], index: 4, kind: input, shape index: {}]
  %s5 = inlined_call_operand.vmem [shape: f32[1,128], index: 5, kind: input, shape index: {}]
  %s6 = inlined_call_operand.hbm [shape: f32[256,128], index: 6, kind: input, shape index: {}]
  %s7 = inlined_call_operand.vmem [shape: f32[1,128], index: 7, kind: input, shape index: {}]
  %s8 = inlined_call_operand.vmem [shape: f32[1,128], index: 8, kind: input, shape index: {}]
  %s9 = inlined_call_operand.<no memory space> [shape: f32[1,1], index: 9, kind: input, shape index: {}]
  %s10 = inlined_call_operand.vmem [shape: f32[8,1], index: 10, kind: output, shape index: {}]
  %s11 = sld [smem:[#allocation0]]
  $region54: #{tpu_custom_call.1} parent=0
    _
  %s13 = ssub.s32 1, %s11
  %s14 = scalar_select 0, %s13, %s11
  %15 = sst [smem:[#allocation2]] %s9
  $region1: #{tpu_custom_call.1} parent=0
    #allocation3 [shape = 'u8[131072]{0}', space=vmem, size = 0x20000, scoped, tag = 'input window, operand 6, single buffered']
    #allocation4 [shape = 's32[1]{0}', space=sflag, size = 0x4, scoped, tag = 'scoped memory for tpu_custom_call.1']
    %16 = vsyncpa [#allocation4], 0
    // Predicated region
    $region2: #{tpu_custom_call.1} parent=1 // pred_check
      _
    $region3: #{tpu_custom_call.1} parent=1 // pred_check_branch
      %18 = sbr.rel (0) target = $region5
    $region4: #{tpu_custom_call.1} parent=1 // pred_region
      _
    $region5: #{tpu_custom_call.1} parent=1 // pred_fallthru
      _
    // Predicated region
    $region6: #{tpu_custom_call.1} parent=1 // pred_check
      _
    $region7: #{tpu_custom_call.1} parent=1 // pred_check_branch
      %20 = sbr.rel (0) target = $region9
    $region8: #{tpu_custom_call.1} parent=1 // pred_region
      _
    $region9: #{tpu_custom_call.1} parent=1 // pred_fallthru
      _
    // Predicated region
    $region10: #{tpu_custom_call.1} parent=1 // pred_check
      _
    $region11: #{tpu_custom_call.1} parent=1 // pred_check_branch
      %22 = sbr.rel (0) target = $region13
    $region12: #{tpu_custom_call.1} parent=1 // pred_region
      _
    $region13: #{tpu_custom_call.1} parent=1 // pred_fallthru
      _
    // Predicated region
    $region14: #{tpu_custom_call.1} parent=1 // pred_check
      _
    $region15: #{tpu_custom_call.1} parent=1 // pred_check_branch
      %24 = sbr.rel (0) target = $region17
    $region16: #{tpu_custom_call.1} parent=1 // pred_region
      _
    $region17: #{tpu_custom_call.1} parent=1 // pred_fallthru
      _
    // Predicated region
    $region18: #{tpu_custom_call.1} parent=1 // pred_check
      _
    $region19: #{tpu_custom_call.1} parent=1 // pred_check_branch
      %26 = sbr.rel (0) target = $region21
    $region20: #{tpu_custom_call.1} parent=1 // pred_region
      _
    $region21: #{tpu_custom_call.1} parent=1 // pred_fallthru
      _
    // Predicated region
    $region22: #{tpu_custom_call.1} parent=1 // pred_check
      _
    $region23: #{tpu_custom_call.1} parent=1 // pred_check_branch
      %28 = sbr.rel (0) target = $region25
    $region24: #{tpu_custom_call.1} parent=1 // pred_region
      _
    $region25: #{tpu_custom_call.1} parent=1 // pred_fallthru
      _
    // Predicated region
    $region26: #{tpu_custom_call.1} parent=1 // pred_check
      _
    $region27: #{tpu_custom_call.1} parent=1 // pred_check_branch
      %30 = sbr.rel (0) target = $region29
    $region28: #{tpu_custom_call.1} parent=1 // pred_region
      %s32 = ssub.s32 4096, 4096
      %33 = vsyncadd [#allocation4], %s32
      %s34 = sshll.u32 [#allocation3], 4
      %s35 = int_to_ptr.vmem [resolvable:$true] %s34
      %40 = dma.hbm_to_vmem [thread:$0]  %s6, 4096, %s35, [#allocation4], 128, 128, 8
    $region29: #{tpu_custom_call.1} parent=1 // pred_fallthru
      _
    // Predicated region
    $region30: #{tpu_custom_call.1} parent=1 // pred_check
      _
    $region31: #{tpu_custom_call.1} parent=1 // pred_check_branch
      %42 = sbr.rel (0) target = $region33
    $region32: #{tpu_custom_call.1} parent=1 // pred_region
      _
    $region33: #{tpu_custom_call.1} parent=1 // pred_fallthru
      _
    // Predicated region
    $region34: #{tpu_custom_call.1} parent=1 // pred_check
      _
    $region35: #{tpu_custom_call.1} parent=1 // pred_check_branch
      %44 = sbr.rel (0) target = $region37
    $region36: #{tpu_custom_call.1} parent=1 // pred_region
      _
    $region37: #{tpu_custom_call.1} parent=1 // pred_fallthru
      _
    // Predicated region
    $region38: #{tpu_custom_call.1} parent=1 // pred_check
      _
    $region39: #{tpu_custom_call.1} parent=1 // pred_check_branch
      %46 = sbr.rel (0) target = $region41
    $region40: #{tpu_custom_call.1} parent=1 // pred_region
      _
    $region41: #{tpu_custom_call.1} parent=1 // pred_fallthru
      _
    // Predicated region
    $region42: #{tpu_custom_call.1} parent=1 // pred_check
      _
    $region43: #{tpu_custom_call.1} parent=1 // pred_check_branch
      %48 = sbr.rel (0) target = $region45
    $region44: #{tpu_custom_call.1} parent=1 // pred_region
      %49 = dma.done [#allocation4], 4096
    $region45: #{tpu_custom_call.1} parent=1 // pred_fallthru
      _
    %v50 = vld [vmem:[%s0] sm:$0xff]
    %v51 = vld [vmem:[%s1] sm:$0xff]
    %v52 = vld [vmem:[%s2] sm:$0x7]
    %v53 = vld [vmem:[%s4] sm:$0x1]
    %55 = vset.pattern.permute.xlu0 0
    %56 = vperm.xlu0 %55, %v50
    %v57 = vpop.permute.xlu0 %56
    %v59 = vlaneseq
    %v60 = vshrl.u32 %v59, 7
    %v61 = vsub.s32 0, %v60
    %v62 = vrot.slane %v52, %v61
    %v63 = vmul.f32 %v57, %v62
    %v64 = vld [vmem:[%s3] sm:$0x1]
    %v66 = vlaneseq
    %v67 = vshrl.u32 %v66, 7
    %v68 = vsub.s32 0, %v67
    %v69 = vrot.slane %v64, %v68
    %v71 = vadd.f32 %v63, %v69
    %72 = vset.pattern.permute.xlu0 1
    %73 = vperm.xlu0 %72, %v50
    %v74 = vpop.permute.xlu0 %73
    %v76 = vlaneseq
    %v77 = vshrl.u32 %v76, 7
    %v78 = vsub.s32 1, %v77
    %v79 = vrot.slane %v52, %v78
    %v80 = vmul.f32 %v74, %v79
    %v81 = vadd.f32 %v71, %v80
    %82 = vset.pattern.permute.xlu0 2
    %83 = vperm.xlu0 %82, %v50
    %v84 = vpop.permute.xlu0 %83
    %v86 = vlaneseq
    %v87 = vshrl.u32 %v86, 7
    %v88 = vsub.s32 2, %v87
    %v89 = vrot.slane %v52, %v88
    %v90 = vmul.f32 %v84, %v89
    %v91 = vadd.f32 %v81, %v90
    %v92 = vmax.f32 %v91, 0.0
    %94 = vset.pattern.permute.xlu0 0
    %95 = vperm.xlu0 %94, %v51
    %v96 = vpop.permute.xlu0 %95
    %v99 = vlaneseq
    %v100 = vshrl.u32 %v99, 7
    %v101 = vsub.s32 0, %v100
    %v102 = vrot.slane %v53, %v101
    %v104 = vmul.f32 %v96, %v102
    %v105 = vld [vmem:[%s5] sm:$0x1]
    %v107 = vlaneseq
    %v108 = vshrl.u32 %v107, 7
    %v109 = vsub.s32 0, %v108
    %v110 = vrot.slane %v105, %v109
    %v112 = vadd.f32 %v104, %v110
    %v113 = vmax.f32 %v112, 0.0
    %v114 = vld [vmem:[#allocation3] sm:$0xff]
    %v115 = vld [vmem:[#allocation3 + $0x8] sm:$0xff]
    %v116 = vld [vmem:[#allocation3 + $0x10] sm:$0xff]
    %v117 = vld [vmem:[#allocation3 + $0x18] sm:$0xff]
    %v118 = vld [vmem:[#allocation3 + $0x20] sm:$0xff]
    %v119 = vld [vmem:[#allocation3 + $0x28] sm:$0xff]
    %v120 = vld [vmem:[#allocation3 + $0x30] sm:$0xff]
    %v121 = vld [vmem:[#allocation3 + $0x38] sm:$0xff]
    %v122 = vld [vmem:[#allocation3 + $0x40] sm:$0xff]
    %v123 = vld [vmem:[#allocation3 + $0x48] sm:$0xff]
    %v124 = vld [vmem:[#allocation3 + $0x50] sm:$0xff]
    %v125 = vld [vmem:[#allocation3 + $0x58] sm:$0xff]
    %v126 = vld [vmem:[#allocation3 + $0x60] sm:$0xff]
    %v127 = vld [vmem:[#allocation3 + $0x68] sm:$0xff]
    %v128 = vld [vmem:[#allocation3 + $0x70] sm:$0xff]
    %v129 = vld [vmem:[#allocation3 + $0x78] sm:$0xff]
    %v130 = vld [vmem:[#allocation3 + $0x80] sm:$0xff]
    %v131 = vld [vmem:[#allocation3 + $0x88] sm:$0xff]
    %v132 = vld [vmem:[#allocation3 + $0x90] sm:$0xff]
    %v133 = vld [vmem:[#allocation3 + $0x98] sm:$0xff]
    %v134 = vld [vmem:[#allocation3 + $0xa0] sm:$0xff]
    %v135 = vld [vmem:[#allocation3 + $0xa8] sm:$0xff]
    %v136 = vld [vmem:[#allocation3 + $0xb0] sm:$0xff]
    %v137 = vld [vmem:[#allocation3 + $0xb8] sm:$0xff]
    %v138 = vld [vmem:[#allocation3 + $0xc0] sm:$0xff]
    %v139 = vld [vmem:[#allocation3 + $0xc8] sm:$0xff]
    %v140 = vld [vmem:[#allocation3 + $0xd0] sm:$0xff]
    %v141 = vld [vmem:[#allocation3 + $0xd8] sm:$0xff]
    %v142 = vld [vmem:[#allocation3 + $0xe0] sm:$0xff]
    %v143 = vld [vmem:[#allocation3 + $0xe8] sm:$0xff]
    %v144 = vld [vmem:[#allocation3 + $0xf0] sm:$0xff]
    %v145 = vld [vmem:[#allocation3 + $0xf8] sm:$0xff]
    %v146 = vld [vmem:[%s7] sm:$0x1]
    %v148 = vlaneseq
    %v149 = vshrl.u32 %v148, 7
    %v150 = vsub.s32 0, %v149
    %v151 = vrot.slane %v146, %v150
    %153 = vmatprep.subr.mxu0 0.0
    %154 = vmatpush1.msra.mxu0 %v114
    %155 = vmatprep.subr.mxu0 0.0
    %156 = vmatpush1.msra.mxu0 %v115
    %157 = vmatprep.subr.mxu0 0.0
    %158 = vmatpush1.msra.mxu0 %v116
    %159 = vmatprep.subr.mxu0 0.0
    %160 = vmatpush1.msra.mxu0 %v117
    %161 = vmatprep.subr.mxu0 0.0
    %162 = vmatpush1.msra.mxu0 %v118
    %163 = vmatprep.subr.mxu0 0.0
    %164 = vmatpush1.msra.mxu0 %v119
    %165 = vmatprep.subr.mxu0 0.0
    %166 = vmatpush1.msra.mxu0 %v120
    %167 = vmatprep.subr.mxu0 0.0
    %168 = vmatpush1.msra.mxu0 %v121
    %169 = vmatprep.subr.mxu0 0.0
    %170 = vmatpush1.msra.mxu0 %v122
    %171 = vmatprep.subr.mxu0 0.0
    %172 = vmatpush1.msra.mxu0 %v123
    %173 = vmatprep.subr.mxu0 0.0
    %174 = vmatpush1.msra.mxu0 %v124
    %175 = vmatprep.subr.mxu0 0.0
    %176 = vmatpush1.msra.mxu0 %v125
    %177 = vmatprep.subr.mxu0 0.0
    %178 = vmatpush1.msra.mxu0 %v126
    %179 = vmatprep.subr.mxu0 0.0
    %180 = vmatpush1.msra.mxu0 %v127
    %181 = vmatprep.subr.mxu0 0.0
    %182 = vmatpush1.msra.mxu0 %v128
    %183 = vmatprep.subr.mxu0 0.0
    %184 = vmatpush1.msra.mxu0 %v129
    %185 = vmatprep.subr.mxu0 0.0
    %186 = vmatpush1.msra.mxu0 %v130
    %187 = vmatprep.subr.mxu0 0.0
    %188 = vmatpush1.msra.mxu0 %v131
    %189 = vmatprep.subr.mxu0 0.0
    %190 = vmatpush1.msra.mxu0 %v132
    %191 = vmatprep.subr.mxu0 0.0
    %192 = vmatpush1.msra.mxu0 %v133
    %193 = vmatprep.subr.mxu0 0.0
    %194 = vmatpush1.msra.mxu0 %v134
    %195 = vmatprep.subr.mxu0 0.0
    %196 = vmatpush1.msra.mxu0 %v135
    %197 = vmatprep.subr.mxu0 0.0
    %198 = vmatpush1.msra.mxu0 %v136
    %199 = vmatprep.subr.mxu0 0.0
    %200 = vmatpush1.msra.mxu0 %v137
    %201 = vmatprep.subr.mxu0 0.0
    %202 = vmatpush1.msra.mxu0 %v138
    %203 = vmatprep.subr.mxu0 0.0
    %204 = vmatpush1.msra.mxu0 %v139
    %205 = vmatprep.subr.mxu0 0.0
    %206 = vmatpush1.msra.mxu0 %v140
    %207 = vmatprep.subr.mxu0 0.0
    %208 = vmatpush1.msra.mxu0 %v141
    %209 = vmatprep.subr.mxu0 0.0
    %210 = vmatpush1.msra.mxu0 %v142
    %211 = vmatprep.subr.mxu0 0.0
    %212 = vmatpush1.msra.mxu0 %v143
    %213 = vmatprep.subr.mxu0 0.0
    %214 = vmatpush1.msra.mxu0 %v144
    %215 = vmatprep.subr.mxu0 0.0
    %216 = vmatpush1.msra.mxu0 %v145
    %217 = vmatprep.mubr.f32.mxu0 %v113
    %218 = vmatmul.mubr.f32.gmra.mrb[0].mxu0 %v92
    %v219 = vpop.f32.mrb[0].mxu0
    %v220 = vadd.f32 %v151, %v219
    %v221 = vpop.f32.mrb[0].mxu0
    %222 = vdwg.mxu0
    %v223 = vmax.f32 %v220, 0.0
    %v224 = vld [vmem:[%s8] sm:$0x1]
    %v226 = vlaneseq
    %v227 = vshrl.u32 %v226, 7
    %v228 = vsub.s32 0, %v227
    %v229 = vrot.slane %v224, %v228
    %v231 = vmul.f32 %v223, %v229
    %232 = vadd.xlane.f32.xlu0 %v231
    %v233 = vpop.xlane.xlu0 %232
    %s234 = sld [smem:[#allocation2]]
    %v235 = vstv %s234
    %v236 = vadd.f32 %v233, %v235
    %vm237 = vcmask 7168
    %238 = vst.msk [vmem:[%s10] sm:$0xff] %vm237, %v236
    // Predicated region
    $region46: #{tpu_custom_call.1} parent=1 // pred_check
      _
    $region47: #{tpu_custom_call.1} parent=1 // pred_check_branch
      %240 = sbr.rel (0) target = $region49
    $region48: #{tpu_custom_call.1} parent=1 // pred_region
      _
    $region49: #{tpu_custom_call.1} parent=1 // pred_fallthru
      _
    // Predicated region
    $region50: #{tpu_custom_call.1} parent=1 // pred_check
      _
    $region51: #{tpu_custom_call.1} parent=1 // pred_check_branch
      %242 = sbr.rel (0) target = $region53
    $region52: #{tpu_custom_call.1} parent=1 // pred_region
      _
    $region53: #{tpu_custom_call.1} parent=1 // pred_fallthru
      _
    %243 = vsyncpa [#allocation4], 1

</llo_original>
